<compile_context>
chip_gen: v7x
topology: tpu7x:2x2x1
jax: 0.10.0
libtpu: 0.0.40
codegen_flags: <defaults>
</compile_context>

<pallas_src>
import jax
import jax.numpy as jnp
from jax import lax
from jax.experimental import pallas as pl
from jax.experimental.pallas import tpu as pltpu

K = 3          # kernel size
PAD = 1        # conv-transpose padding -> effective conv padding = K-1-PAD = 1
EPS = 1e-5     # GroupNorm eps (PyTorch default)


def _res_unit_t_kernel(p_ref, w_ref, b_ref, g_ref, beta_ref, o_ref):
    # p_ref:    (nb, K*K*Cin, H*W)   im2col patches, NCHW-derived, lane axis = H*W
    # w_ref:    (Cout, K*K*Cin)      effective conv weight, flattened tap-major
    # b_ref:    (Cout, 1)            conv-transpose bias
    # g_ref:    (Cout, 1)            GroupNorm gamma
    # beta_ref: (Cout, 1)            GroupNorm beta
    # o_ref:    (nb, Cout, H*W)      NCHW-flattened output (lane-dense stores)
    nb = p_ref.shape[0]
    hw = p_ref.shape[2]

    w = w_ref[...]            # hoisted out of the per-image loop
    b = b_ref[...]
    g = g_ref[...]
    be = beta_ref[...]
    inv_hw = 1.0 / float(hw)

    for n in range(nb):       # static unroll, nb is small
        # One fused matmul for all 9 taps: (Cout, 9*Cin) @ (9*Cin, HW) -> (Cout, HW)
        acc = jnp.dot(w, p_ref[n], preferred_element_type=jnp.float32)
        acc = jnp.maximum(acc + b, 0.0)                       # bias + ReLU

        # GroupNorm(C, C): per-channel stats over H*W (lane-axis reduce),
        # affine folded into a single FMA.
        s1 = jnp.sum(acc, axis=1, keepdims=True)              # (Cout, 1)
        s2 = jnp.sum(acc * acc, axis=1, keepdims=True)        # (Cout, 1)
        mean = s1 * inv_hw
        var = jnp.maximum(s2 * inv_hw - mean * mean, 0.0)
        scale = g * lax.rsqrt(var + EPS)
        shift = be - mean * scale
        o_ref[n] = (acc * scale + shift).astype(o_ref.dtype)


def res_unit_t(x_nchw, wt, bias, gamma, beta, *, nb=None):
    """x_nchw: (N, Cin, H, W); wt: ConvTranspose2d weight (Cin, Cout, K, K)."""
    N, Cin, H, W = x_nchw.shape
    Cout = wt.shape[1]
    HW = H * W
    KKC = K * K * Cin
    eff_pad = K - 1 - PAD

    # Batch elements per grid step: 2 parallel blocks when N is even and >= 4
    # (keeps both v7x TensorCores fed while amortizing per-step overhead).
    if nb is None:
        nb = N // 2 if (N % 2 == 0 and N >= 4) else 1
    assert N % nb == 0, "nb must divide N"

    # --- plain-JAX glue: weight flattening + im2col ---------------------------
    # ConvTranspose(stride=1) -> equivalent Conv weight (HWIO), then flatten to
    # (Cout, K*K*Cin) with tap-major / cin-minor ordering.
    w_eff = jnp.transpose(wt[:, :, ::-1, ::-1], (2, 3, 0, 1))       # (K, K, Cin, Cout)
    w_flat = jnp.transpose(w_eff, (3, 0, 1, 2)).reshape(Cout, KKC)  # (Cout, K*K*Cin)

    x_pad = jnp.pad(
        x_nchw, ((0, 0), (0, 0), (eff_pad, eff_pad), (eff_pad, eff_pad))
    )                                                                # (N, Cin, H+2, W+2)
    taps = []
    for ky in range(K):
        for kx in range(K):
            taps.append(x_pad[:, :, ky:ky + H, kx:kx + W].reshape(N, Cin, HW))
    patches = jnp.stack(taps, axis=1).reshape(N, KKC, HW)            # (N, 9*Cin, H*W)

    b2 = bias.reshape(Cout, 1)
    g2 = gamma.reshape(Cout, 1)
    be2 = beta.reshape(Cout, 1)

    out = pl.pallas_call(
        _res_unit_t_kernel,
        out_shape=jax.ShapeDtypeStruct((N, Cout, HW), x_nchw.dtype),
        grid_spec=pltpu.PrefetchScalarGridSpec(
            num_scalar_prefetch=0,
            grid=(N // nb,),
            in_specs=[
                pl.BlockSpec((nb, KKC, HW), lambda i: (i, 0, 0)),
                pl.BlockSpec((Cout, KKC), lambda i: (0, 0)),
                pl.BlockSpec((Cout, 1), lambda i: (0, 0)),
                pl.BlockSpec((Cout, 1), lambda i: (0, 0)),
                pl.BlockSpec((Cout, 1), lambda i: (0, 0)),
            ],
            out_specs=pl.BlockSpec((nb, Cout, HW), lambda i: (i, 0, 0)),
        ),
        compiler_params=pltpu.CompilerParams(
            dimension_semantics=("parallel",),
            # NOTE: for very large H*W on v7x (64 MiB VMEM) set vmem_limit_bytes
            # explicitly or tile H with a two-pass GroupNorm.
        ),
    )(patches, w_flat, b2, g2, be2)

    return out.reshape(N, Cout, H, W)  # already NCHW — no transpose needed


def _reference(x_nchw, wt, bias, gamma, beta):
    """Pure-JAX reference of the same forward pass (for a sanity check)."""
    w_eff = jnp.transpose(wt[:, :, ::-1, ::-1], (2, 3, 0, 1))
    x_nhwc = jnp.transpose(x_nchw, (0, 2, 3, 1))
    y = lax.conv_general_dilated(
        x_nhwc, w_eff, window_strides=(1, 1),
        padding=((1, 1), (1, 1)),
        dimension_numbers=("NHWC", "HWIO", "NHWC"),
    ) + bias
    y = jnp.maximum(y, 0.0)
    mean = jnp.mean(y, axis=(1, 2), keepdims=True)
    var = jnp.mean((y - mean) ** 2, axis=(1, 2), keepdims=True)
    y = (y - mean) * lax.rsqrt(var + EPS) * gamma + beta
    return jnp.transpose(y, (0, 3, 1, 2))


if __name__ == "__main__":
    # Small, deterministic shapes: N=2, Cin=4, Cout=8, H=W=16.
    key = jax.random.PRNGKey(0)
    k_x, k_w, k_b, k_g, k_be = jax.random.split(key, 5)

    N, Cin, Cout, H, W = 2, 4, 8, 16, 16

    x = jax.random.normal(k_x, (N, Cin, H, W), dtype=jnp.float32)
    # ConvTranspose2d weight shape: (in_ch, out_ch, K, K)
    wt = jax.random.normal(k_w, (Cin, Cout, K, K), dtype=jnp.float32) * 0.1
    bias = jax.random.normal(k_b, (Cout,), dtype=jnp.float32) * 0.1
    # GroupNorm affine params (randomized deterministically to make the test
    # non-trivial; PyTorch default init is ones/zeros).
    gamma = 1.0 + 0.1 * jax.random.normal(k_g, (Cout,), dtype=jnp.float32)
    beta = 0.1 * jax.random.normal(k_be, (Cout,), dtype=jnp.float32)

    out = res_unit_t(x, wt, bias, gamma, beta)
    out = jax.block_until_ready(out)

    ref = _reference(x, wt, bias, gamma, beta)
    assert out.shape == (N, Cout, H, W)
    assert jnp.allclose(out, ref, rtol=1e-4, atol=1e-4), "mismatch vs reference"

    print("KERNEL_OK")
</pallas_src>

<mosaic_0001>
module attributes {stable_mosaic.version = 11 : i64} {
  func.func @_res_unit_t_kernel(%arg0: i32, %arg1: memref<1x36x256xf32, #tpu.memory_space<vmem>>, %arg2: memref<8x36xf32, #tpu.memory_space<vmem>>, %arg3: memref<8x1xf32, #tpu.memory_space<vmem>>, %arg4: memref<8x1xf32, #tpu.memory_space<vmem>>, %arg5: memref<8x1xf32, #tpu.memory_space<vmem>>, %arg6: memref<1x8x256xf32, #tpu.memory_space<vmem>>) attributes {dimension_semantics = [#tpu.dimension_semantics<parallel>], iteration_bounds = array<i64: 2>, scalar_prefetch = 0 : i64, scratch_operands = 0 : i64, tpu.core_type = #tpu.core_type<tc>, window_params = [{transform_indices = @transform_0, window_bounds = array<i64: 1, 36, 256>}, {pipeline_mode = #tpu.pipeline_mode<synchronous>, transform_indices = @transform_1, window_bounds = array<i64: 8, 36>}, {pipeline_mode = #tpu.pipeline_mode<synchronous>, transform_indices = @transform_2, window_bounds = array<i64: 8, 1>}, {pipeline_mode = #tpu.pipeline_mode<synchronous>, transform_indices = @transform_3, window_bounds = array<i64: 8, 1>}, {pipeline_mode = #tpu.pipeline_mode<synchronous>, transform_indices = @transform_4, window_bounds = array<i64: 8, 1>}, {transform_indices = @transform_5, window_bounds = array<i64: 1, 8, 256>}]} {
    %c0 = arith.constant 0 : index
    %c0_0 = arith.constant 0 : index
    %0 = vector.load %arg2[%c0, %c0_0] : memref<8x36xf32, #tpu.memory_space<vmem>>, vector<8x36xf32>
    %c0_1 = arith.constant 0 : index
    %c0_2 = arith.constant 0 : index
    %1 = vector.load %arg3[%c0_1, %c0_2] : memref<8x1xf32, #tpu.memory_space<vmem>>, vector<8x1xf32>
    %c0_3 = arith.constant 0 : index
    %c0_4 = arith.constant 0 : index
    %2 = vector.load %arg4[%c0_3, %c0_4] : memref<8x1xf32, #tpu.memory_space<vmem>>, vector<8x1xf32>
    %c0_5 = arith.constant 0 : index
    %c0_6 = arith.constant 0 : index
    %3 = vector.load %arg5[%c0_5, %c0_6] : memref<8x1xf32, #tpu.memory_space<vmem>>, vector<8x1xf32>
    %c0_7 = arith.constant 0 : index
    %c0_8 = arith.constant 0 : index
    %c0_9 = arith.constant 0 : index
    %4 = vector.load %arg1[%c0_7, %c0_8, %c0_9] : memref<1x36x256xf32, #tpu.memory_space<vmem>>, vector<1x36x256xf32>
    %5 = vector.shape_cast %4 : vector<1x36x256xf32> to vector<36x256xf32>
    %cst = arith.constant dense<0.000000e+00> : vector<8x256xf32>
    %6 = tpu.matmul %0, %5, %cst {dimension_numbers = #tpu.dot_dimension_numbers<[1], [0], [0], [1], [0, 0, 1, 1], [], []>} : vector<8x36xf32>, vector<36x256xf32>, vector<8x256xf32> -> vector<8x256xf32>
    %7 = vector.broadcast %1 : vector<8x1xf32> to vector<8x256xf32>
    %8 = arith.addf %6, %7 : vector<8x256xf32>
    %cst_10 = arith.constant 0.000000e+00 : f32
    %9 = vector.broadcast %cst_10 : f32 to vector<8x256xf32>
    %10 = arith.maximumf %8, %9 : vector<8x256xf32>
    %cst_11 = arith.constant dense<0.000000e+00> : vector<8xf32>
    %11 = vector.multi_reduction <add>, %10, %cst_11 [1] : vector<8x256xf32> to vector<8xf32>
    %12 = vector.shape_cast %11 : vector<8xf32> to vector<8x1xf32>
    %13 = arith.mulf %10, %10 : vector<8x256xf32>
    %cst_12 = arith.constant dense<0.000000e+00> : vector<8xf32>
    %14 = vector.multi_reduction <add>, %13, %cst_12 [1] : vector<8x256xf32> to vector<8xf32>
    %15 = vector.shape_cast %14 : vector<8xf32> to vector<8x1xf32>
    %cst_13 = arith.constant 3.906250e-03 : f32
    %16 = vector.broadcast %cst_13 : f32 to vector<8x1xf32>
    %17 = arith.mulf %12, %16 : vector<8x1xf32>
    %cst_14 = arith.constant 3.906250e-03 : f32
    %18 = vector.broadcast %cst_14 : f32 to vector<8x1xf32>
    %19 = arith.mulf %15, %18 : vector<8x1xf32>
    %20 = arith.mulf %17, %17 : vector<8x1xf32>
    %21 = arith.subf %19, %20 : vector<8x1xf32>
    %cst_15 = arith.constant 0.000000e+00 : f32
    %22 = vector.broadcast %cst_15 : f32 to vector<8x1xf32>
    %23 = arith.maximumf %21, %22 : vector<8x1xf32>
    %cst_16 = arith.constant 9.99999974E-6 : f32
    %24 = vector.broadcast %cst_16 : f32 to vector<8x1xf32>
    %25 = arith.addf %23, %24 : vector<8x1xf32>
    %26 = math.rsqrt %25 : vector<8x1xf32>
    %27 = arith.mulf %2, %26 : vector<8x1xf32>
    %28 = arith.mulf %17, %27 : vector<8x1xf32>
    %29 = arith.subf %3, %28 : vector<8x1xf32>
    %30 = vector.broadcast %27 : vector<8x1xf32> to vector<8x256xf32>
    %31 = arith.mulf %10, %30 : vector<8x256xf32>
    %32 = vector.broadcast %29 : vector<8x1xf32> to vector<8x256xf32>
    %33 = arith.addf %31, %32 : vector<8x256xf32>
    %c0_17 = arith.constant 0 : index
    %c0_18 = arith.constant 0 : index
    %c0_19 = arith.constant 0 : index
    %34 = vector.load %arg6[%c0_17, %c0_18, %c0_19] : memref<1x8x256xf32, #tpu.memory_space<vmem>>, vector<1x8x256xf32>
    %35 = vector.shape_cast %34 : vector<1x8x256xf32> to vector<8x256xf32>
    %36 = vector.shape_cast %33 : vector<8x256xf32> to vector<1x8x256xf32>
    tpu.vector_store %arg6[%c0_17, %c0_18, %c0_19], %36 {strides = array<i32>} : memref<1x8x256xf32, #tpu.memory_space<vmem>>, vector<1x8x256xf32>,
    return
  }
  func.func @transform_0(%arg0: i32) -> (i32, i32, i32) {
    %c0_i32 = arith.constant 0 : i32
    %c0_i32_0 = arith.constant 0 : i32
    %c0_i32_1 = arith.constant 0 : i32
    return %arg0, %c0_i32, %c0_i32_0 : i32, i32, i32
  }
  func.func @transform_1(%arg0: i32) -> (i32, i32) {
    %c0_i32 = arith.constant 0 : i32
    %c0_i32_0 = arith.constant 0 : i32
    %c0_i32_1 = arith.constant 0 : i32
    return %c0_i32, %c0_i32_0 : i32, i32
  }
  func.func @transform_2(%arg0: i32) -> (i32, i32) {
    %c0_i32 = arith.constant 0 : i32
    %c0_i32_0 = arith.constant 0 : i32
    %c0_i32_1 = arith.constant 0 : i32
    return %c0_i32, %c0_i32_0 : i32, i32
  }
  func.func @transform_3(%arg0: i32) -> (i32, i32) {
    %c0_i32 = arith.constant 0 : i32
    %c0_i32_0 = arith.constant 0 : i32
    %c0_i32_1 = arith.constant 0 : i32
    return %c0_i32, %c0_i32_0 : i32, i32
  }
  func.func @transform_4(%arg0: i32) -> (i32, i32) {
    %c0_i32 = arith.constant 0 : i32
    %c0_i32_0 = arith.constant 0 : i32
    %c0_i32_1 = arith.constant 0 : i32
    return %c0_i32, %c0_i32_0 : i32, i32
  }
  func.func @transform_5(%arg0: i32) -> (i32, i32, i32) {
    %c0_i32 = arith.constant 0 : i32
    %c0_i32_0 = arith.constant 0 : i32
    %c0_i32_1 = arith.constant 0 : i32
    return %arg0, %c0_i32, %c0_i32_0 : i32, i32, i32
  }
}

</mosaic_0001>

<llo_original>
// kernel: tpu_custom_call.1
$region0: #{tpu_custom_call.1}
  #allocation0 [shape = 'u32[]', space=smem, size = 0x4, offset = 0x4, fixed_abs, tag = 'smem constant byte address 0x4 - core index']
  #allocation1 [shape = 'u32[144,128]{1,0:T(1,128)}', space=vmem, size = 0x12000, scoped, tag = 'internal scratch']
  %s0 = inlined_call_operand.vmem [shape: f32[2,36,256], index: 0, kind: input, shape index: {}]
  %s1 = inlined_call_operand.vmem [shape: f32[8,36], index: 1, kind: input, shape index: {}]
  %s2 = inlined_call_operand.vmem [shape: f32[8,1], index: 2, kind: input, shape index: {}]
  %s3 = inlined_call_operand.vmem [shape: f32[8,1], index: 3, kind: input, shape index: {}]
  %s4 = inlined_call_operand.vmem [shape: f32[8,1], index: 4, kind: input, shape index: {}]
  %s5 = inlined_call_operand.hbm [shape: f32[2,8,256], index: 5, kind: output, shape index: {}]
  %s6 = sld [smem:[#allocation0]]
  $region53: #{tpu_custom_call.1} parent=0
    _
  %s8 = ssub.s32 1, %s6
  %s9 = scalar_select 0, %s8, %s6
  $region1: #{tpu_custom_call.1} parent=0
    #allocation2 [shape = 'u8[16384]{0}', space=vmem, size = 0x4000, scoped, tag = 'output window, operand 0']
    #allocation3 [shape = 's32[2]{0}', space=sflag, size = 0x8, scoped, tag = 'scoped memory for tpu_custom_call.1']
    %10 = vsyncpa [#allocation3], 0
    %s11 = scalar_lea.sflag [#allocation3], 1
    %12 = vsyncpa %s11, 0
    loop: start=0, step=1, limit=4
    $region2: #{tpu_custom_call.1} parent=1 // loop_pre_header
      _
    $region3: #{tpu_custom_call.1} parent=1 // loop_header
      %s14 = sphi 0, %s18
      %p15 = scmp.ge.s32.totalorder %s14, 4
      %s24 = sphi 0, %s26
      %s27 = sphi 0, %s24
      %s28 = sphi 0, %s27
      %s44 = sphi 0, %s28
      %s48 = sphi 0, %s48
      %s50 = sphi 0, %s48
      %s51 = sphi 0, %s50
      %s65 = sphi 0, %s51
      %s69 = sphi 0, %s69
      %s71 = sphi 0, %s69
      %s72 = sphi 0, %s71
      %s86 = sphi 0, %s72
      %s90 = sphi 0, %s90
      %s92 = sphi 0, %s90
      %s93 = sphi 0, %s92
      %s107 = sphi 0, %s93
      %s111 = sphi 0, %s111
      %s113 = sphi 0, %s111
      %s114 = sphi 0, %s113
      %s128 = sphi 0, %s114
      %s134 = sphi 0, %s136
      %s137 = sphi 0, %s134
      %s138 = sphi 0, %s137
      %s154 = sphi 0, %s138
    $region4: #{tpu_custom_call.1} parent=1 // loop_header_branch
      %17 = sbr.rel (%p15) target = $region8
    $region5: #{tpu_custom_call.1} parent=1 // loop_body
      %s19 = ssub.s32 %s14, 1
      %s20 = ssub.s32 %s14, 2
      %s21 = sadd.s32 %s14, 1
      %s22 = ssub.s32 %s14, %s21
      %p23 = scmp.eq.s32.totalorder %s22, 0
      %s25 = sadd.s32 %s24, 1
      %s26 = scalar_select %p23, %s24, %s25
      %p29 = pneg %p23
      %p30 = scmp.eq.s32.totalorder %s14, 1
      %p31 = por %p29, %p30
      %p32 = scmp.ne.s32.totalorder %s24, %s27
      %p33 = scmp.eq.s32.totalorder %s14, 0
      %p34 = por %p32, %p33
      %p35 = scmp.ne.s32.totalorder %s24, %s27
      %p36 = scmp.eq.s32.totalorder %s19, 1
      %p37 = por %p35, %p36
      %p38 = scmp.ne.s32.totalorder %s27, %s28
      %p39 = scmp.eq.s32.totalorder %s19, 0
      %p40 = por %p38, %p39
      %p41 = scmp.ne.s32.totalorder %s27, %s28
      %p42 = scmp.eq.s32.totalorder %s20, 1
      %p43 = por %p41, %p42
      %p45 = scmp.ne.s32.totalorder %s28, %s44
      %p46 = scmp.eq.s32.totalorder %s20, 0
      %p47 = por %p45, %p46
      %s49 = sadd.s32 %s48, 1
      %p52 = scmp.eq.s32.totalorder %s14, 1
      %p53 = scmp.ne.s32.totalorder %s48, %s50
      %p54 = scmp.eq.s32.totalorder %s14, 0
      %p55 = por %p53, %p54
      %p56 = scmp.ne.s32.totalorder %s48, %s50
      %p57 = scmp.eq.s32.totalorder %s19, 1
      %p58 = por %p56, %p57
      %p59 = scmp.ne.s32.totalorder %s50, %s51
      %p60 = scmp.eq.s32.totalorder %s19, 0
      %p61 = por %p59, %p60
      %p62 = scmp.ne.s32.totalorder %s50, %s51
      %p63 = scmp.eq.s32.totalorder %s20, 1
      %p64 = por %p62, %p63
      %p66 = scmp.ne.s32.totalorder %s51, %s65
      %p67 = scmp.eq.s32.totalorder %s20, 0
      %p68 = por %p66, %p67
      %s70 = sadd.s32 %s69, 1
      %p73 = scmp.eq.s32.totalorder %s14, 1
      %p74 = scmp.ne.s32.totalorder %s69, %s71
      %p75 = scmp.eq.s32.totalorder %s14, 0
      %p76 = por %p74, %p75
      %p77 = scmp.ne.s32.totalorder %s69, %s71
      %p78 = scmp.eq.s32.totalorder %s19, 1
      %p79 = por %p77, %p78
      %p80 = scmp.ne.s32.totalorder %s71, %s72
      %p81 = scmp.eq.s32.totalorder %s19, 0
      %p82 = por %p80, %p81
      %p83 = scmp.ne.s32.totalorder %s71, %s72
      %p84 = scmp.eq.s32.totalorder %s20, 1
      %p85 = por %p83, %p84
      %p87 = scmp.ne.s32.totalorder %s72, %s86
      %p88 = scmp.eq.s32.totalorder %s20, 0
      %p89 = por %p87, %p88
      %s91 = sadd.s32 %s90, 1
      %p94 = scmp.eq.s32.totalorder %s14, 1
      %p95 = scmp.ne.s32.totalorder %s90, %s92
      %p96 = scmp.eq.s32.totalorder %s14, 0
      %p97 = por %p95, %p96
      %p98 = scmp.ne.s32.totalorder %s90, %s92
      %p99 = scmp.eq.s32.totalorder %s19, 1
      %p100 = por %p98, %p99
      %p101 = scmp.ne.s32.totalorder %s92, %s93
      %p102 = scmp.eq.s32.totalorder %s19, 0
      %p103 = por %p101, %p102
      %p104 = scmp.ne.s32.totalorder %s92, %s93
      %p105 = scmp.eq.s32.totalorder %s20, 1
      %p106 = por %p104, %p105
      %p108 = scmp.ne.s32.totalorder %s93, %s107
      %p109 = scmp.eq.s32.totalorder %s20, 0
      %p110 = por %p108, %p109
      %s112 = sadd.s32 %s111, 1
      %p115 = scmp.eq.s32.totalorder %s14, 1
      %p116 = scmp.ne.s32.totalorder %s111, %s113
      %p117 = scmp.eq.s32.totalorder %s14, 0
      %p118 = por %p116, %p117
      %p119 = scmp.ne.s32.totalorder %s111, %s113
      %p120 = scmp.eq.s32.totalorder %s19, 1
      %p121 = por %p119, %p120
      %p122 = scmp.ne.s32.totalorder %s113, %s114
      %p123 = scmp.eq.s32.totalorder %s19, 0
      %p124 = por %p122, %p123
      %p125 = scmp.ne.s32.totalorder %s113, %s114
      %p126 = scmp.eq.s32.totalorder %s20, 1
      %p127 = por %p125, %p126
      %p129 = scmp.ne.s32.totalorder %s114, %s128
      %p130 = scmp.eq.s32.totalorder %s20, 0
      %p131 = por %p129, %p130
      %s132 = ssub.s32 %s14, %s21
      %p133 = scmp.eq.s32.totalorder %s132, 0
      %s135 = sadd.s32 %s134, 1
      %s136 = scalar_select %p133, %s134, %s135
      %p139 = pneg %p133
      %p140 = scmp.eq.s32.totalorder %s14, 1
      %p141 = por %p139, %p140
      %p142 = scmp.ne.s32.totalorder %s134, %s137
      %p143 = scmp.eq.s32.totalorder %s14, 0
      %p144 = por %p142, %p143
      %p145 = scmp.ne.s32.totalorder %s134, %s137
      %p146 = scmp.eq.s32.totalorder %s19, 1
      %p147 = por %p145, %p146
      %p148 = scmp.ne.s32.totalorder %s137, %s138
      %p149 = scmp.eq.s32.totalorder %s19, 0
      %p150 = por %p148, %p149
      %p151 = scmp.ne.s32.totalorder %s137, %s138
      %p152 = scmp.eq.s32.totalorder %s20, 1
      %p153 = por %p151, %p152
      %p155 = scmp.ne.s32.totalorder %s138, %s154
      %p156 = scmp.eq.s32.totalorder %s20, 0
      %p157 = por %p155, %p156
      %p158 = scmp.le.s32.totalorder 1, %s14
      %p159 = scmp.lt.s32.totalorder %s14, 3
      %p160 = pnand %p158, %p159
      %p161 = pneg %p160
      // Predicated region
      $region9: #{tpu_custom_call.1} parent=5 // pred_check
        _
      $region10: #{tpu_custom_call.1} parent=5 // pred_check_branch
        %163 = sbr.rel (%p160) target = $region12
      $region11: #{tpu_custom_call.1} parent=5 // pred_region
        %s164 = ssub.s32 %s14, 1
        // Predicated region
        $region13: #{tpu_custom_call.1} parent=11 // pred_check
          %p165 = pneg %p61
        $region14: #{tpu_custom_call.1} parent=11 // pred_check_branch
          %167 = sbr.rel (%p165) target = $region16
        $region15: #{tpu_custom_call.1} parent=11 // pred_region
          _
        $region16: #{tpu_custom_call.1} parent=11 // pred_fallthru
          _
        // Predicated region
        $region17: #{tpu_custom_call.1} parent=11 // pred_check
          %p168 = pneg %p82
        $region18: #{tpu_custom_call.1} parent=11 // pred_check_branch
          %170 = sbr.rel (%p168) target = $region20
        $region19: #{tpu_custom_call.1} parent=11 // pred_region
          _
        $region20: #{tpu_custom_call.1} parent=11 // pred_fallthru
          _
        // Predicated region
        $region21: #{tpu_custom_call.1} parent=11 // pred_check
          %p171 = pneg %p103
        $region22: #{tpu_custom_call.1} parent=11 // pred_check_branch
          %173 = sbr.rel (%p171) target = $region24
        $region23: #{tpu_custom_call.1} parent=11 // pred_region
          _
        $region24: #{tpu_custom_call.1} parent=11 // pred_fallthru
          _
        // Predicated region
        $region25: #{tpu_custom_call.1} parent=11 // pred_check
          %p174 = pneg %p124
        $region26: #{tpu_custom_call.1} parent=11 // pred_check_branch
          %176 = sbr.rel (%p174) target = $region28
        $region27: #{tpu_custom_call.1} parent=11 // pred_region
          _
        $region28: #{tpu_custom_call.1} parent=11 // pred_fallthru
          _
      $region12: #{tpu_custom_call.1} parent=5 // pred_fallthru
        _
      %p177 = scmp.lt.s32.totalorder %s14, 2
      // Predicated region
      $region29: #{tpu_custom_call.1} parent=5 // pred_check
        %p178 = pneg %p177
      $region30: #{tpu_custom_call.1} parent=5 // pred_check_branch
        %180 = sbr.rel (%p178) target = $region32
      $region31: #{tpu_custom_call.1} parent=5 // pred_region
        // Predicated region
        $region33: #{tpu_custom_call.1} parent=31 // pred_check
          %p181 = pneg %p34
        $region34: #{tpu_custom_call.1} parent=31 // pred_check_branch
          %183 = sbr.rel (%p181) target = $region36
        $region35: #{tpu_custom_call.1} parent=31 // pred_region
          %p184 = scmp.lt.s32.totalorder %s14, 1
          %s185 = scalar_select %p184, %s14, 1
          %s186 = smul.addr %s185, 10
          %s187 = smul.addr %s186, 8
          %s188 = scalar_lea.vmem %s0, %s187
        $region36: #{tpu_custom_call.1} parent=31 // pred_fallthru
          _
      $region32: #{tpu_custom_call.1} parent=5 // pred_fallthru
        _
      %p189 = scmp.le.s32.totalorder 1, %s14
      %p190 = scmp.lt.s32.totalorder %s14, 3
      %p191 = pnand %p189, %p190
      %p192 = pneg %p191
      // Predicated region
      $region37: #{tpu_custom_call.1} parent=5 // pred_check
        _
      $region38: #{tpu_custom_call.1} parent=5 // pred_check_branch
        %194 = sbr.rel (%p191) target = $region40
      $region39: #{tpu_custom_call.1} parent=5 // pred_region
        %s195 = ssub.s32 %s14, 1
        %p196 = scmp.lt.s32.totalorder %s19, 1
        %s197 = scalar_select %p196, %s19, 1
        %s198 = smul.addr %s197, 10
        %s199 = smul.addr %s198, 8
        %s200 = scalar_lea.vmem %s0, %s199
        %p201 = pneg %p40
        %p202 = pneg %p37
        %p203 = pneg %p61
        %p204 = pneg %p58
        %p205 = pneg %p82
        %p206 = pneg %p79
        %p207 = pneg %p103
        %p208 = pneg %p100
        %p209 = pneg %p124
        %p210 = pneg %p121
        %p211 = pneg %p150
        %p212 = pneg %p147
        %s213 = sand.u32 %s137, 1
        %s214 = scalar_lea.sflag [#allocation3], %s213
        %s215 = sand.u32 %s137, 1
        %s216 = smul.addr %s215, 16
        %s217 = scalar_lea.vmem [#allocation2], %s216
        %p218 = scmp.lt.s32.totalorder %s19, 1
        %s219 = scalar_select %p218, %s19, 1
        %s220 = smul.addr %s219, 10
        %s221 = smul.addr %s220, 8
        %s222 = scalar_lea.vmem %s0, %s221
        %v223 = vld [vmem:[%s1] sm:$0xff]
        %v224 = vld [vmem:[%s2] sm:$0xff]
        %v225 = vld [vmem:[%s3] sm:$0xff]
        %v226 = vld [vmem:[%s4] sm:$0xff]
        %v227 = vld [vmem:[%s222] sm:$0xff]
        %v228 = vld [vmem:[%s222 + $0x8] sm:$0xff]
        %v229 = vld [vmem:[%s222 + $0x10] sm:$0xff]
        %v230 = vld [vmem:[%s222 + $0x18] sm:$0xff]
        %v231 = vld [vmem:[%s222 + $0x20] sm:$0xff]
        %v232 = vld [vmem:[%s222 + $0x28] sm:$0xff]
        %v233 = vld [vmem:[%s222 + $0x30] sm:$0xff]
        %v234 = vld [vmem:[%s222 + $0x38] sm:$0xff]
        %v235 = vld [vmem:[%s222 + $0x40] sm:$0xf]
        %v236 = vld [vmem:[%s222 + $0x48] sm:$0xf]
        %238 = vset.pattern.permute.xlu0 0
        %239 = vperm.xlu0 %238, %v224
        %v240 = vpop.permute.xlu0 %239
        %vm242 = vcmask 293888
        %v244 = vsel %vm242, %v223, 0
        %vm246 = vcmask 1043456
        %v248 = vsel %vm246, %v235, 0
        %v251 = vsel %vm246, %v236, 0
        %253 = vmatprep.subr.mxu0 %v228
        %254 = vmatpush1.msra.mxu0 %v227
        %255 = vmatprep.subr.mxu0 %v230
        %256 = vmatpush1.msra.mxu0 %v229
        %257 = vmatprep.subr.mxu0 %v232
        %258 = vmatpush1.msra.mxu0 %v231
        %259 = vmatprep.subr.mxu0 %v234
        %260 = vmatpush1.msra.mxu0 %v233
        %261 = vmatprep.subr.mxu0 %v251
        %262 = vmatpush1.msra.mxu0 %v248
        %263 = vmatprep.subr.mxu0 0.0
        %264 = vmatpush1.msra.mxu0 0.0
        %265 = vmatprep.subr.mxu0 0.0
        %266 = vmatpush1.msra.mxu0 0.0
        %267 = vmatprep.subr.mxu0 0.0
        %268 = vmatpush1.msra.mxu0 0.0
        %269 = vmatprep.subr.mxu0 0.0
        %270 = vmatpush1.msra.mxu0 0.0
        %271 = vmatprep.subr.mxu0 0.0
        %272 = vmatpush1.msra.mxu0 0.0
        %273 = vmatprep.subr.mxu0 0.0
        %274 = vmatpush1.msra.mxu0 0.0
        %275 = vmatprep.subr.mxu0 0.0
        %276 = vmatpush1.msra.mxu0 0.0
        %277 = vmatprep.subr.mxu0 0.0
        %278 = vmatpush1.msra.mxu0 0.0
        %279 = vmatprep.subr.mxu0 0.0
        %280 = vmatpush1.msra.mxu0 0.0
        %281 = vmatprep.subr.mxu0 0.0
        %282 = vmatpush1.msra.mxu0 0.0
        %283 = vmatprep.subr.mxu0 0.0
        %284 = vmatpush1.msra.mxu0 0.0
        %285 = vmatprep.subr.mxu0 0.0
        %286 = vmatpush1.msra.mxu0 0.0
        %287 = vmatprep.subr.mxu0 0.0
        %288 = vmatpush1.msra.mxu0 0.0
        %289 = vmatprep.subr.mxu0 0.0
        %290 = vmatpush1.msra.mxu0 0.0
        %291 = vmatprep.subr.mxu0 0.0
        %292 = vmatpush1.msra.mxu0 0.0
        %293 = vmatprep.subr.mxu0 0.0
        %294 = vmatpush1.msra.mxu0 0.0
        %295 = vmatprep.subr.mxu0 0.0
        %296 = vmatpush1.msra.mxu0 0.0
        %297 = vmatprep.subr.mxu0 0.0
        %298 = vmatpush1.msra.mxu0 0.0
        %299 = vmatprep.subr.mxu0 0.0
        %300 = vmatpush1.msra.mxu0 0.0
        %301 = vmatprep.subr.mxu0 0.0
        %302 = vmatpush1.msra.mxu0 0.0
        %303 = vmatprep.subr.mxu0 0.0
        %304 = vmatpush1.msra.mxu0 0.0
        %305 = vmatprep.subr.mxu0 0.0
        %306 = vmatpush1.msra.mxu0 0.0
        %307 = vmatprep.subr.mxu0 0.0
        %308 = vmatpush1.msra.mxu0 0.0
        %309 = vmatprep.subr.mxu0 0.0
        %310 = vmatpush1.msra.mxu0 0.0
        %311 = vmatprep.subr.mxu0 0.0
        %312 = vmatpush1.msra.mxu0 0.0
        %313 = vmatprep.subr.mxu0 0.0
        %314 = vmatpush1.msra.mxu0 0.0
        %315 = vmatprep.subr.mxu0 0.0
        %316 = vmatpush1.msra.mxu0 0.0
        %317 = vmatprep.mubr.f32.mxu0 0.0
        %318 = vmatmul.mubr.f32.gmra.mrb[0].mxu0 %v244
        %v319 = vpop.f32.mrb[0].mxu0
        %v320 = vadd.f32 %v240, %v319
        %v321 = vpop.f32.mrb[0].mxu0
        %v322 = vadd.f32 %v240, %v321
        %323 = vdwg.mxu0
        %v324 = vmax.f32 %v320, 0.0
        %v325 = vmax.f32 %v322, 0.0
        %v326 = vadd.f32 %v324, %v325
        %327 = vadd.xlane.f32.xlu0 %v326
        %v328 = vpop.xlane.xlu0 %327
        %v329 = vmul.f32 %v324, %v324
        %v330 = vmul.f32 %v325, %v325
        %v331 = vadd.f32 %v329, %v330
        %332 = vadd.xlane.f32.xlu0 %v331
        %v333 = vpop.xlane.xlu0 %332
        %v334 = vmul.f32 %v328, 0.00390625
        %v335 = vmul.f32 %v333, 0.00390625
        %v336 = vmul.f32 %v334, %v334
        %v337 = vsub.f32 %v335, %v336
        %v338 = vmax.f32 %v337, 0.0
        %v339 = vadd.f32 %v338, 1e-05
        %v340 = vrsqrt.pop %v339
        %v341 = vmul.f32 %v225, %v340
        %v342 = vmul.f32 %v334, %v341
        %v343 = vsub.f32 %v226, %v342
        %345 = vset.pattern.permute.xlu0 0
        %346 = vperm.xlu0 %345, %v341
        %v347 = vpop.permute.xlu0 %346
        %v349 = vmul.f32 %v324, %v347
        %v350 = vmul.f32 %v325, %v347
        %352 = vset.pattern.permute.xlu0 0
        %353 = vperm.xlu0 %352, %v343
        %v354 = vpop.permute.xlu0 %353
        %v356 = vadd.f32 %v349, %v354
        %v357 = vadd.f32 %v350, %v354
        %358 = vst [vmem:[%s217] sm:$0xff] %v356
        %359 = vst [vmem:[%s217 + $0x8] sm:$0xff] %v357
        %s360 = sand.u32 %s137, 1
        %s361 = scalar_lea.sflag [#allocation3], %s360
        %s362 = sand.u32 %s137, 1
        %s363 = smul.addr %s362, 16
        %s364 = scalar_lea.vmem [#allocation2], %s363
        // Predicated region
        $region41: #{tpu_custom_call.1} parent=39 // pred_check
          %p365 = pneg %p147
        $region42: #{tpu_custom_call.1} parent=39 // pred_check_branch
          %367 = sbr.rel (%p365) target = $region44
        $region43: #{tpu_custom_call.1} parent=39 // pred_region
          %s369 = ssub.s32 256, 256
          %370 = vsyncadd %s361, %s369
          %s371 = smul.addr %s19, 2
          %s372 = smul.addr %s371, 128
          %s373 = scalar_lea.hbm %s5, %s372
          %s375 = sshll.u32 %s364, 4
          %s376 = int_to_ptr.vmem [resolvable:$true] %s375
          %378 = dma.vmem_to_hbm [thread:$0]  %s376, 256, %s373, %s361
        $region44: #{tpu_custom_call.1} parent=39 // pred_fallthru
          _
      $region40: #{tpu_custom_call.1} parent=5 // pred_fallthru
        _
      %p379 = scmp.le.s32.totalorder 2, %s14
      // Predicated region
      $region45: #{tpu_custom_call.1} parent=5 // pred_check
        %p380 = pneg %p379
      $region46: #{tpu_custom_call.1} parent=5 // pred_check_branch
        %382 = sbr.rel (%p380) target = $region48
      $region47: #{tpu_custom_call.1} parent=5 // pred_region
        %s383 = ssub.s32 %s14, 2
        // Predicated region
        $region49: #{tpu_custom_call.1} parent=47 // pred_check
          %p384 = pneg %p153
        $region50: #{tpu_custom_call.1} parent=47 // pred_check_branch
          %386 = sbr.rel (%p384) target = $region52
        $region51: #{tpu_custom_call.1} parent=47 // pred_region
          %s387 = sand.u32 %s138, 1
          %s388 = scalar_lea.sflag [#allocation3], %s387
          %s389 = sand.u32 %s138, 1
          %s390 = smul.addr %s389, 16
          %s391 = scalar_lea.vmem [#allocation2], %s390
          %392 = dma.done %s388, 256
        $region52: #{tpu_custom_call.1} parent=47 // pred_fallthru
          _
      $region48: #{tpu_custom_call.1} parent=5 // pred_fallthru
        _
    $region6: #{tpu_custom_call.1} parent=1 // loop_footer
      %s18 = sadd.s32 1, %s14
    $region7: #{tpu_custom_call.1} parent=1 // loop_footer_branch
      %13 = sbr.rel target = $region3
    $region8: #{tpu_custom_call.1} parent=1 // loop_exit
      _
    %393 = vsyncpa [#allocation3], 1
    %s394 = scalar_lea.sflag [#allocation3], 1
    %395 = vsyncpa %s394, 1

</llo_original>
